<compile_context>
chip_gen: v5e
topology: v5e:2x2
jax: 0.10.0
libtpu: 0.0.40
codegen_flags: <defaults>
</compile_context>

<pallas_src>
import functools

import jax
import jax.numpy as jnp
from jax import lax
from jax.experimental import pallas as pl
from jax.experimental.pallas import tpu as pltpu


# ----------------------------------------------------------------------------
# Action library (mirrors action_fns / action_arities / action_names)
# ----------------------------------------------------------------------------
ACTION_NAMES   = ['c', 'x0', 'x1', 'x2', 'x3', 'add', 'sub', 'mul', 'exp', 'tanh']
ACTION_ARITIES = [0,    0,    0,    0,    0,    2,     2,     2,     1,     1]
ACTION_FNS     = [None, 0,    1,    2,    3,
                  jnp.add, jnp.subtract, jnp.multiply, jnp.exp, jnp.tanh]
TRANSCENDENTAL_NAMES = ('exp', 'tanh')


class ActionNode:
    """Static (trace-time) mirror of the torch ActionNode."""

    def __init__(self, index, c_index=None):
        self.name = ACTION_NAMES[index]
        self.fn = ACTION_FNS[index]
        self.arity = ACTION_ARITIES[index]
        self.left, self.right = None, None
        self.c_index = c_index

    def add_child(self, child):
        if self.left is None:
            self.left = child
        elif self.right is None:
            self.right = child
        else:
            raise RuntimeError('adding more than 2 children')


class ExpressionTree:
    """Static mirror of the torch ExpressionTree (constants are JAX params)."""

    def __init__(self, encoding, key):
        c_counter = 0
        nodes = {}
        for i, code in enumerate(encoding):
            if code < 0:
                continue
            if code == 0:
                nodes[i] = ActionNode(code, c_index=c_counter)
                c_counter += 1
            else:
                nodes[i] = ActionNode(code)
            if i > 0:
                nodes[(i - 1) // 2].add_child(nodes[i])
        # deterministic stand-in for torch.rand(c_counter)
        self.constants = jax.random.uniform(key, (c_counter,), dtype=jnp.float32)
        self.nc = c_counter
        self.root = nodes[0]


# ----------------------------------------------------------------------------
# Trace-time helpers
# ----------------------------------------------------------------------------
def _collect_cols(node, cols):
    if node.arity >= 1:
        _collect_cols(node.left, cols)
    if node.arity == 2:
        _collect_cols(node.right, cols)
    if node.arity == 0 and node.name != 'c':
        cols.add(node.fn)


def _count_ops(node):
    """Per-element (flops, transcendentals) for the cost estimate."""
    f = t = 0
    if node.arity >= 1:
        lf, lt = _count_ops(node.left)
        f, t = f + lf, t + lt
    if node.arity == 2:
        rf, rt = _count_ops(node.right)
        f, t = f + rf, t + rt
    if node.arity == 2:
        f += 1
    elif node.arity == 1:
        if node.name in TRANSCENDENTAL_NAMES:
            t += 1
        else:
            f += 1
    return f, t


def _eval_node(node, cols, consts, c_offset):
    if node.arity == 2:
        return node.fn(_eval_node(node.left, cols, consts, c_offset),
                       _eval_node(node.right, cols, consts, c_offset))
    if node.arity == 1:
        return node.fn(_eval_node(node.left, cols, consts, c_offset))
    if node.name == 'c':
        return consts[c_offset + node.c_index]   # hoisted SMEM scalar
    return cols[node.fn]                          # (cs, 128) input-variable slab


# ----------------------------------------------------------------------------
# Kernel
# ----------------------------------------------------------------------------
def _ensemble_kernel(xT_ref, c_ref, out_ref, *, trees, offsets, cs):
    # xT_ref : (D, TS, 128)  lane-packed tile of X^T in VMEM
    # c_ref  : (NC,)         float32 constants in SMEM
    # out_ref: (E, TS, 128)  one lane-dense row-slab per surviving tree
    ts = out_ref.shape[1]

    # Hoist all scalar constant reads out of the chunk loop (cheap SMEM reads,
    # done once per grid step).
    consts = [c_ref[i] for i in range(c_ref.shape[0])]

    used = set()
    for t in trees:
        _collect_cols(t.root, used)
    used = sorted(used)

    def eval_chunk(base, nrows):
        # Load each used input column once per chunk; re-loading from VMEM per
        # chunk is nearly free vs the HBM bottleneck, and keeps vreg pressure
        # bounded regardless of the (large) DMA tile size.
        cols = {c: xT_ref[c, pl.ds(base, nrows), :] for c in used}
        for e, (tree, off) in enumerate(zip(trees, offsets)):
            r = _eval_node(tree.root, cols, consts, off)
            if getattr(r, 'shape', None) != (nrows, 128):
                r = jnp.broadcast_to(r, (nrows, 128))
            out_ref[e, pl.ds(base, nrows), :] = r.astype(out_ref.dtype)

    if ts <= cs:
        eval_chunk(0, ts)
    else:
        n_chunks = ts // cs   # wrapper guarantees cs | ts

        def body(j, carry):
            base = pl.multiple_of(j * cs, cs)
            eval_chunk(base, cs)
            return carry

        lax.fori_loop(0, n_chunks, body, 0, unroll=2)


# ----------------------------------------------------------------------------
# ETEnsemble wrapper
# ----------------------------------------------------------------------------
def _round_up(a, b):
    return -(-a // b) * b


def _round_down(a, b):
    return (a // b) * b


class ETEnsemble:
    def __init__(self, expressions):
        self.nc = 0
        self.expressions = []
        self.offsets = []
        for expression in expressions:
            if expression.nc > 0:           # drop constant-free trees (as in torch)
                self.offsets.append(self.nc)
                self.expressions.append(expression)
                self.nc += expression.nc
        if self.expressions:
            self.constants = jnp.concatenate([e.constants for e in self.expressions])
        else:
            self.constants = jnp.zeros((0,), jnp.float32)

    def forward(self, X, tn=262144):
        # X: (N, D) float32, matching the torch forward signature.
        # TODO(synk): the transpose is a full extra HBM pass for this mem-bound
        # op; producers that can emit X feature-major should call
        # forward_feature_major(xT) directly and skip it.
        xT = jnp.transpose(X).astype(jnp.float32)
        return self.forward_feature_major(xT, tn=tn)

    def forward_feature_major(self, xT, tn=262144):
        # Primary entry point. xT: (D, N) float32 (batch on the lane axis).
        D, N = xT.shape
        E = len(self.expressions)
        if E == 0:
            # torch.stack([]) would raise; return an empty (0, N) result instead.
            return jnp.zeros((0, N), jnp.float32)
        xT = xT.astype(jnp.float32)

        # --- lane packing: only pad to the next multiple of 128 (never to the
        #     tile size) — the grid handles the ragged last block itself. ------
        NB = -(-N // 128)                    # 128-lane groups
        n128 = NB * 128
        if n128 != N:
            # TODO(synk): only hit for non-128-aligned batches; costs one extra
            # pad pass. Callers should prefer 128-aligned N.
            xT = jnp.pad(xT, ((0, 0), (0, n128 - N)))
        xT3 = xT.reshape(D, NB, 128)         # contiguous reshape (no relayout)

        # --- tile sizing (TS = sublane groups of 128 batch elements) ----------
        bytes_per_group = (D + E) * 128 * 4
        vmem_budget = 24 << 20               # double-buffered in+out working set
        ts_cap = max(8, _round_down(vmem_budget // (2 * bytes_per_group), 8))
        ts = max(8, _round_down(max(tn, 128) // 128, 8))
        ts = min(ts, ts_cap)
        if ts >= NB:
            if NB >= 16:
                # Keep >=2 (usually 4) grid steps: feeds both v7x TensorCores
                # and gives the DMA pipeline something to overlap.
                ts = max(8, _round_up(-(-NB // 4), 8))
            else:
                ts = NB                      # one small block covering everything
        grid = -(-NB // ts)

        # --- inner chunk size: bound vreg pressure independent of tile size ---
        used = set()
        for t in self.expressions:
            _collect_cols(t.root, used)
        n_used = max(1, len(used))
        cs_pref = 32 if n_used <= 4 else (16 if n_used <= 8 else 8)
        if ts % cs_pref == 0:
            cs = cs_pref
        elif ts % 16 == 0:
            cs = 16
        elif ts % 8 == 0:
            cs = 8
        else:
            cs = ts                          # tiny single-chunk tile

        kernel = functools.partial(
            _ensemble_kernel, trees=self.expressions, offsets=self.offsets, cs=cs)

        # --- cost estimate + explicit VMEM limit -------------------------------
        flops = transc = 0
        for t in self.expressions:
            f, tr = _count_ops(t.root)
            flops += f
            transc += tr
        footprint = 2 * (D + E) * ts * 128 * 4       # double-buffered blocks
        vmem_limit = int(min(56 << 20, max(32 << 20, footprint + (8 << 20))))

        out = pl.pallas_call(
            kernel,
            out_shape=jax.ShapeDtypeStruct((E, NB, 128), jnp.float32),
            grid_spec=pltpu.PrefetchScalarGridSpec(
                num_scalar_prefetch=0,
                grid=(grid,),
                in_specs=[
                    pl.BlockSpec((D, ts, 128), lambda i: (0, i, 0)),
                    pl.BlockSpec(memory_space=pltpu.MemorySpace.SMEM),
                ],
                out_specs=pl.BlockSpec((E, ts, 128), lambda i: (0, i, 0)),
            ),
            compiler_params=pltpu.CompilerParams(
                dimension_semantics=("parallel",),
                vmem_limit_bytes=vmem_limit),
            cost_estimate=pl.CostEstimate(
                flops=flops * n128,
                transcendentals=transc * n128,
                bytes_accessed=(D + E) * n128 * 4 + self.nc * 4),
        )(xT3, self.constants)

        out = out.reshape(E, n128)
        if n128 != N:
            out = out[:, :N]
        return out


# ----------------------------------------------------------------------------
# Pure-JAX reference (direct port of ActionNode.eval)
# ----------------------------------------------------------------------------
def _ref_eval(node, X, constants):
    if node.arity == 2:
        return node.fn(_ref_eval(node.left, X, constants),
                       _ref_eval(node.right, X, constants))
    if node.arity == 1:
        return node.fn(_ref_eval(node.left, X, constants))
    if node.name == 'c':
        return constants[node.c_index]
    return X[:, node.fn]


def reference_forward(ensemble, X):
    results = []
    for tree, off in zip(ensemble.expressions, ensemble.offsets):
        consts = ensemble.constants[off:off + tree.nc]
        r = jnp.broadcast_to(_ref_eval(tree.root, X, consts), (X.shape[0],))
        results.append(r)
    return jnp.stack(results, axis=0)


# ----------------------------------------------------------------------------
if __name__ == "__main__":
    key = jax.random.PRNGKey(0)
    k_x, k_t1, k_t2, k_t3, k_t4, k_t5 = jax.random.split(key, 6)

    # heap encodings (index into the action library, -1 = empty slot)
    #   tree1: add(mul(c, x0), x1)        -> 1 constant
    #   tree2: tanh(mul(c, x1))           -> 1 constant
    #   tree3: sub(x2, c)                 -> 1 constant
    #   tree4: add(x0, x1)                -> 0 constants (dropped by ensemble)
    #   tree5: exp(mul(c, x3))            -> 1 constant
    enc1 = [5, 7, 2, 0, 1, -1, -1]
    enc2 = [9, 7, -1, 0, 2, -1, -1]
    enc3 = [6, 3, 0]
    enc4 = [5, 1, 2]
    enc5 = [8, 7, -1, 0, 4, -1, -1]

    trees = [ExpressionTree(enc1, k_t1),
             ExpressionTree(enc2, k_t2),
             ExpressionTree(enc3, k_t3),
             ExpressionTree(enc4, k_t4),
             ExpressionTree(enc5, k_t5)]

    ensemble = ETEnsemble(trees)
    E = len(ensemble.expressions)

    D = 4

    # 1) small, 128-aligned batch (single tiny block, no padding)
    N = 256
    X = jax.random.normal(k_x, (N, D), dtype=jnp.float32)
    out = jax.block_until_ready(ensemble.forward(X))
    ref = reference_forward(ensemble, X)
    assert out.shape == (E, N)
    assert jnp.allclose(out, ref, rtol=1e-4, atol=1e-5)

    # 2) non-multiple-of-128 batch (exercise the 128-pad / tail-slice path)
    N2 = 200
    X2 = jax.random.normal(k_x, (N2, D), dtype=jnp.float32)
    out2 = jax.block_until_ready(ensemble.forward(X2))
    ref2 = reference_forward(ensemble, X2)
    assert out2.shape == (E, N2)
    assert jnp.allclose(out2, ref2, rtol=1e-4, atol=1e-5)

    # 3) larger batch with a small requested tile: exercises the multi-step
    #    grid, the ragged (masked) last block, and the in-kernel chunk loop.
    N3 = 16600
    X3 = jax.random.normal(k_x, (N3, D), dtype=jnp.float32)
    xT3 = jnp.transpose(X3)
    out3 = jax.block_until_ready(ensemble.forward_feature_major(xT3, tn=8192))
    ref3 = reference_forward(ensemble, X3)
    assert out3.shape == (E, N3)
    assert jnp.allclose(out3, ref3, rtol=1e-4, atol=1e-5)

    print("KERNEL_OK")
</pallas_src>

<mosaic_0001>
module attributes {stable_mosaic.version = 11 : i64} {
  func.func @_ensemble_kernel(%arg0: i32, %arg1: memref<4x2x128xf32, #tpu.memory_space<vmem>>, %arg2: memref<4xf32, #tpu.memory_space<smem>>, %arg3: memref<4x2x128xf32, #tpu.memory_space<vmem>>) attributes {dimension_semantics = [#tpu.dimension_semantics<parallel>], iteration_bounds = array<i64: 1>, scalar_prefetch = 0 : i64, scratch_operands = 0 : i64, tpu.core_type = #tpu.core_type<tc>, window_params = [{transform_indices = @transform_0, window_bounds = array<i64: 4, 2, 128>}, {transform_indices = @transform_1, window_bounds = array<i64: 4>}, {transform_indices = @transform_2, window_bounds = array<i64: 4, 2, 128>}]} {
    %c0 = arith.constant 0 : index
    %0 = memref.load %arg2[%c0] : memref<4xf32, #tpu.memory_space<smem>>
    %c1 = arith.constant 1 : index
    %1 = memref.load %arg2[%c1] : memref<4xf32, #tpu.memory_space<smem>>
    %c2 = arith.constant 2 : index
    %2 = memref.load %arg2[%c2] : memref<4xf32, #tpu.memory_space<smem>>
    %c3 = arith.constant 3 : index
    %3 = memref.load %arg2[%c3] : memref<4xf32, #tpu.memory_space<smem>>
    %c0_0 = arith.constant 0 : index
    %c0_1 = arith.constant 0 : index
    %c0_2 = arith.constant 0 : index
    %4 = vector.load %arg1[%c0_0, %c0_1, %c0_2] : memref<4x2x128xf32, #tpu.memory_space<vmem>>, vector<1x2x128xf32>
    %5 = vector.shape_cast %4 : vector<1x2x128xf32> to vector<2x128xf32>
    %c1_3 = arith.constant 1 : index
    %c0_4 = arith.constant 0 : index
    %c0_5 = arith.constant 0 : index
    %6 = vector.load %arg1[%c1_3, %c0_4, %c0_5] : memref<4x2x128xf32, #tpu.memory_space<vmem>>, vector<1x2x128xf32>
    %7 = vector.shape_cast %6 : vector<1x2x128xf32> to vector<2x128xf32>
    %c2_6 = arith.constant 2 : index
    %c0_7 = arith.constant 0 : index
    %c0_8 = arith.constant 0 : index
    %8 = vector.load %arg1[%c2_6, %c0_7, %c0_8] : memref<4x2x128xf32, #tpu.memory_space<vmem>>, vector<1x2x128xf32>
    %9 = vector.shape_cast %8 : vector<1x2x128xf32> to vector<2x128xf32>
    %c3_9 = arith.constant 3 : index
    %c0_10 = arith.constant 0 : index
    %c0_11 = arith.constant 0 : index
    %10 = vector.load %arg1[%c3_9, %c0_10, %c0_11] : memref<4x2x128xf32, #tpu.memory_space<vmem>>, vector<1x2x128xf32>
    %11 = vector.shape_cast %10 : vector<1x2x128xf32> to vector<2x128xf32>
    %12 = vector.broadcast %0 : f32 to vector<2x128xf32>
    %13 = arith.mulf %12, %5 : vector<2x128xf32>
    %14 = arith.addf %13, %7 : vector<2x128xf32>
    %c0_12 = arith.constant 0 : index
    %c0_13 = arith.constant 0 : index
    %c0_14 = arith.constant 0 : index
    %15 = vector.load %arg3[%c0_12, %c0_13, %c0_14] : memref<4x2x128xf32, #tpu.memory_space<vmem>>, vector<1x2x128xf32>
    %16 = vector.shape_cast %15 : vector<1x2x128xf32> to vector<2x128xf32>
    %17 = vector.shape_cast %14 : vector<2x128xf32> to vector<1x2x128xf32>
    tpu.vector_store %arg3[%c0_12, %c0_13, %c0_14], %17 {strides = array<i32>} : memref<4x2x128xf32, #tpu.memory_space<vmem>>, vector<1x2x128xf32>,
    %18 = vector.broadcast %1 : f32 to vector<2x128xf32>
    %19 = arith.mulf %18, %7 : vector<2x128xf32>
    %20 = math.tanh %19 : vector<2x128xf32>
    %c1_15 = arith.constant 1 : index
    %c0_16 = arith.constant 0 : index
    %c0_17 = arith.constant 0 : index
    %21 = vector.load %arg3[%c1_15, %c0_16, %c0_17] : memref<4x2x128xf32, #tpu.memory_space<vmem>>, vector<1x2x128xf32>
    %22 = vector.shape_cast %21 : vector<1x2x128xf32> to vector<2x128xf32>
    %23 = vector.shape_cast %20 : vector<2x128xf32> to vector<1x2x128xf32>
    tpu.vector_store %arg3[%c1_15, %c0_16, %c0_17], %23 {strides = array<i32>} : memref<4x2x128xf32, #tpu.memory_space<vmem>>, vector<1x2x128xf32>,
    %24 = vector.broadcast %2 : f32 to vector<2x128xf32>
    %25 = arith.subf %9, %24 : vector<2x128xf32>
    %c2_18 = arith.constant 2 : index
    %c0_19 = arith.constant 0 : index
    %c0_20 = arith.constant 0 : index
    %26 = vector.load %arg3[%c2_18, %c0_19, %c0_20] : memref<4x2x128xf32, #tpu.memory_space<vmem>>, vector<1x2x128xf32>
    %27 = vector.shape_cast %26 : vector<1x2x128xf32> to vector<2x128xf32>
    %28 = vector.shape_cast %25 : vector<2x128xf32> to vector<1x2x128xf32>
    tpu.vector_store %arg3[%c2_18, %c0_19, %c0_20], %28 {strides = array<i32>} : memref<4x2x128xf32, #tpu.memory_space<vmem>>, vector<1x2x128xf32>,
    %29 = vector.broadcast %3 : f32 to vector<2x128xf32>
    %30 = arith.mulf %29, %11 : vector<2x128xf32>
    %31 = math.exp %30 : vector<2x128xf32>
    %c3_21 = arith.constant 3 : index
    %c0_22 = arith.constant 0 : index
    %c0_23 = arith.constant 0 : index
    %32 = vector.load %arg3[%c3_21, %c0_22, %c0_23] : memref<4x2x128xf32, #tpu.memory_space<vmem>>, vector<1x2x128xf32>
    %33 = vector.shape_cast %32 : vector<1x2x128xf32> to vector<2x128xf32>
    %34 = vector.shape_cast %31 : vector<2x128xf32> to vector<1x2x128xf32>
    tpu.vector_store %arg3[%c3_21, %c0_22, %c0_23], %34 {strides = array<i32>} : memref<4x2x128xf32, #tpu.memory_space<vmem>>, vector<1x2x128xf32>,
    return
  }
  func.func @transform_0(%arg0: i32) -> (i32, i32, i32) {
    %c0_i32 = arith.constant 0 : i32
    %c0_i32_0 = arith.constant 0 : i32
    %c0_i32_1 = arith.constant 0 : i32
    return %c0_i32, %arg0, %c0_i32_0 : i32, i32, i32
  }
  func.func @transform_1(%arg0: i32) -> i32 {
    %c0_i32 = arith.constant 0 : i32
    %c0_i32_0 = arith.constant 0 : i32
    return %c0_i32 : i32
  }
  func.func @transform_2(%arg0: i32) -> (i32, i32, i32) {
    %c0_i32 = arith.constant 0 : i32
    %c0_i32_0 = arith.constant 0 : i32
    %c0_i32_1 = arith.constant 0 : i32
    return %c0_i32, %arg0, %c0_i32_0 : i32, i32, i32
  }
}

</mosaic_0001>

<llo_original>
// kernel: tpu_custom_call.1
$region0: #{tpu_custom_call.1}
  #allocation0 [shape = 'u32[]', space=smem, size = 0x4, offset = 0x4, fixed_abs, tag = 'smem constant byte address 0x4 - core index']
  #allocation1 [shape = 'u32[72,128]{1,0:T(1,128)}', space=vmem, size = 0x9000, scoped, tag = 'internal scratch']
  %s0 = inlined_call_operand.hbm [shape: f32[4,2,128], index: 0, kind: input, shape index: {}]
  %s1 = inlined_call_operand.hbm [shape: f32[4], index: 1, kind: input, shape index: {}]
  %s2 = inlined_call_operand.hbm [shape: f32[4,2,128], index: 2, kind: output, shape index: {}]
  %s3 = sld [smem:[#allocation0]]
  $region26: #{tpu_custom_call.1} parent=0
    _
  %s5 = ssub.s32 1, %s3
  %s6 = scalar_select 0, %s5, %s3
  $region1: #{tpu_custom_call.1} parent=0
    #allocation2 [shape = 'u8[4096]{0}', space=vmem, size = 0x1000, scoped, tag = 'input window, operand 0, single buffered']
    #allocation3 [shape = 's32[1]{0}', space=sflag, size = 0x4, scoped, tag = 'scoped memory for tpu_custom_call.1']
    #allocation4 [shape = 's32[1]{0}', space=sflag, size = 0x4, scoped, tag = 'scoped memory for tpu_custom_call.1']
    #allocation5 [shape = 's32[1]{0}', space=sflag, size = 0x4, scoped, tag = 'scoped memory for tpu_custom_call.1']
    #allocation6 [shape = 'u8[512]{0}', space=smem, size = 0x200, scoped, tag = 'input window, operand 1, single buffered']
    #allocation7 [shape = 'u8[4096]{0}', space=vmem, size = 0x1000, scoped, tag = 'output window, operand 0, single buffered']
    %7 = vsyncpa [#allocation3], 0
    %8 = vsyncpa [#allocation5], 0
    %9 = vsyncpa [#allocation4], 0
    // Predicated region
    $region2: #{tpu_custom_call.1} parent=1 // pred_check
      _
    $region3: #{tpu_custom_call.1} parent=1 // pred_check_branch
      %11 = sbr.rel (0) target = $region5
    $region4: #{tpu_custom_call.1} parent=1 // pred_region
      %13 = vsyncadd [#allocation3], 0
      %s14 = sshll.u32 %s0, 4
      %s15 = int_to_ptr.hbm [resolvable:$true] %s14
      %s16 = sshll.u32 [#allocation2], 4
      %s17 = int_to_ptr.vmem [resolvable:$true] %s16
      %22 = dma.hbm_to_vmem [thread:$0]  %s15, 128, %s17, [#allocation3], 32, 32, 2
    $region5: #{tpu_custom_call.1} parent=1 // pred_fallthru
      _
    // Predicated region
    $region6: #{tpu_custom_call.1} parent=1 // pred_check
      _
    $region7: #{tpu_custom_call.1} parent=1 // pred_check_branch
      %24 = sbr.rel (0) target = $region9
    $region8: #{tpu_custom_call.1} parent=1 // pred_region
      %26 = vsyncadd [#allocation5], 0
      %s28 = sshll.u32 %s1, 4
      %s29 = int_to_ptr.hbm [resolvable:$true] %s28
      %31 = dma.hbm_to_smem %s29, 16, [#allocation6], [#allocation5]
    $region9: #{tpu_custom_call.1} parent=1 // pred_fallthru
      _
    // Predicated region
    $region10: #{tpu_custom_call.1} parent=1 // pred_check
      _
    $region11: #{tpu_custom_call.1} parent=1 // pred_check_branch
      %33 = sbr.rel (0) target = $region13
    $region12: #{tpu_custom_call.1} parent=1 // pred_region
      %35 = dma.done [#allocation3], 128
    $region13: #{tpu_custom_call.1} parent=1 // pred_fallthru
      _
    // Predicated region
    $region14: #{tpu_custom_call.1} parent=1 // pred_check
      _
    $region15: #{tpu_custom_call.1} parent=1 // pred_check_branch
      %37 = sbr.rel (0) target = $region17
    $region16: #{tpu_custom_call.1} parent=1 // pred_region
      %39 = dma.done [#allocation5], 16
    $region17: #{tpu_custom_call.1} parent=1 // pred_fallthru
      _
    %40 = sfence
    %s41 = sld [smem:[#allocation6]]
    %s42 = sld [smem:[#allocation6 + $0x1]]
    %s43 = sld [smem:[#allocation6 + $0x2]]
    %s44 = sld [smem:[#allocation6 + $0x3]]
    %v45 = vld [vmem:[#allocation2] sm:$0x3]
    %s46 = scalar_lea.vmem [#allocation2], 2
    %v47 = vld [vmem:[%s46] sm:$0x3]
    %s48 = scalar_lea.vmem [#allocation2], 4
    %v49 = vld [vmem:[%s48] sm:$0x3]
    %s50 = scalar_lea.vmem [#allocation2], 6
    %v51 = vld [vmem:[%s50] sm:$0x3]
    %v52 = vstv %s41
    %v53 = vmul.f32 %v52, %v45
    %v54 = vadd.f32 %v53, %v47
    %55 = vst [vmem:[#allocation7] sm:$0x3] %v54
    %v56 = vstv %s42
    %v57 = vmul.f32 %v56, %v47
    %v58 = vtanh.pop %v57
    %s59 = scalar_lea.vmem [#allocation7], 2
    %60 = vst [vmem:[%s59] sm:$0x3] %v58
    %v61 = vstv %s43
    %v62 = vsub.f32 %v49, %v61
    %s63 = scalar_lea.vmem [#allocation7], 4
    %64 = vst [vmem:[%s63] sm:$0x3] %v62
    %v65 = vstv %s44
    %v66 = vmul.f32 %v65, %v51
    %v67 = vmul.f32 %v66, 1.442695
    %v68 = vpow.pop %v67
    %s69 = scalar_lea.vmem [#allocation7], 6
    %70 = vst [vmem:[%s69] sm:$0x3] %v68
    // Predicated region
    $region18: #{tpu_custom_call.1} parent=1 // pred_check
      _
    $region19: #{tpu_custom_call.1} parent=1 // pred_check_branch
      %72 = sbr.rel (0) target = $region21
    $region20: #{tpu_custom_call.1} parent=1 // pred_region
      %74 = vsyncadd [#allocation4], 0
      %s75 = sshll.u32 [#allocation7], 4
      %s76 = int_to_ptr.vmem [resolvable:$true] %s75
      %s77 = sshll.u32 %s2, 4
      %s78 = int_to_ptr.hbm [resolvable:$true] %s77
      %83 = dma.vmem_to_hbm [thread:$0]  %s76, 128, %s78, [#allocation4], 32, 32, 2
    $region21: #{tpu_custom_call.1} parent=1 // pred_fallthru
      _
    // Predicated region
    $region22: #{tpu_custom_call.1} parent=1 // pred_check
      _
    $region23: #{tpu_custom_call.1} parent=1 // pred_check_branch
      %85 = sbr.rel (0) target = $region25
    $region24: #{tpu_custom_call.1} parent=1 // pred_region
      %87 = dma.done [#allocation4], 128
    $region25: #{tpu_custom_call.1} parent=1 // pred_fallthru
      _
    %88 = vsyncpa [#allocation3], 1
    %89 = vsyncpa [#allocation4], 1
    %90 = vsyncpa [#allocation5], 1

</llo_original>
